<compile_context>
chip_gen: v5e
topology: v5e:2x2
jax: 0.10.0
libtpu: 0.0.40
codegen_flags: <defaults>
</compile_context>

<pallas_src>
import functools

import jax
import jax.numpy as jnp
from jax import lax
from jax.experimental import pallas as pl
from jax.experimental.pallas import tpu as pltpu


# ----------------------------------------------------------------------------
# Tile-size / VMEM budgeting
# ----------------------------------------------------------------------------
_MAX_TK = 8192            # max reduction-axis tile (elements) per grid step
_VMEM_FRACTION = 0.6      # fraction of physical VMEM budgeted for this kernel
_DEFAULT_SCOPED = 32 << 20
_BF16_NL_THRESHOLD = 256  # Nl at which the Gram is MXU-bound -> feed bf16


def _vmem_capacity_bytes():
    try:
        info = pltpu.get_tpu_info()
        for attr in ("vmem_capacity_bytes", "vmem_size_bytes", "vmem_bytes"):
            v = getattr(info, attr, None)
            if v:
                return int(v)
    except Exception:
        pass
    return 64 << 20  # conservative default (v7x per-TC VMEM)


def _pick_tk(ml, nl, itemsize, fixed_vmem_bytes):
    """Largest K tile (multiple of 128, or all of Ml) fitting the VMEM budget."""
    budget = int(_vmem_capacity_bytes() * _VMEM_FRACTION)
    x_budget = max(budget - fixed_vmem_bytes, 2 * nl * 128 * itemsize)
    tk_cap = min(x_budget // (2 * nl * itemsize), _MAX_TK)
    if ml <= tk_cap:
        return ml                          # single tile: no K loop, no masking
    tk_cap = max(128, (tk_cap // 128) * 128)
    for tk in range(tk_cap, 127, -128):    # prefer a divisor -> no ragged tail
        if ml % tk == 0:
            return tk
    return tk_cap                          # ragged: only the last tile is masked


def _vmem_limit(nl, tk, itemsize, fixed_vmem_bytes):
    need = fixed_vmem_bytes + 2 * nl * tk * itemsize + (8 << 20)  # + headroom
    return int(min(_vmem_capacity_bytes(), max(need, _DEFAULT_SCOPED)))


def _mxu_dtype_for(x_dtype, nl):
    # Down-cast f32 -> bf16 on the MXU feed only where the layer is compute-bound.
    if x_dtype == jnp.float32 and nl >= _BF16_NL_THRESHOLD:
        return jnp.bfloat16
    return None


# ----------------------------------------------------------------------------
# Kernels
# ----------------------------------------------------------------------------
def _accumulate_xxt(x_ref, acc_ref, *, k, ml, tk, mask_tail, mxu_dtype):
    """acc += X_tile @ X_tile.T (contracted over the Ml axis, f32 accumulation)."""
    x = x_ref[...]
    if mask_tail:  # only emitted (statically) for the ragged last tile
        col = k * tk + lax.broadcasted_iota(jnp.int32, x.shape, 1)
        x = jnp.where(col < ml, x, jnp.zeros_like(x))
    if mxu_dtype is not None and x.dtype != mxu_dtype:
        x = x.astype(mxu_dtype)
    acc_ref[...] += lax.dot_general(
        x, x,
        dimension_numbers=(((1,), (1,)), ((), ())),
        preferred_element_type=jnp.float32,
    )


def _gram_kernel(x_ref, g_ref, *, ml, tk, ragged, mxu_dtype):
    """G = (X @ X.T) / (Nl * Ml); accumulates directly into the resident output."""
    k = pl.program_id(0)
    last = pl.num_programs(0) - 1

    @pl.when(k == 0)
    def _():
        g_ref[...] = jnp.zeros_like(g_ref)

    if ragged:
        @pl.when(k != last)
        def _():
            _accumulate_xxt(x_ref, g_ref, k=k, ml=ml, tk=tk,
                            mask_tail=False, mxu_dtype=mxu_dtype)

        @pl.when(k == last)
        def _():
            _accumulate_xxt(x_ref, g_ref, k=k, ml=ml, tk=tk,
                            mask_tail=True, mxu_dtype=mxu_dtype)
    else:
        _accumulate_xxt(x_ref, g_ref, k=k, ml=ml, tk=tk,
                        mask_tail=False, mxu_dtype=mxu_dtype)

    @pl.when(k == last)
    def _():
        nl = g_ref.shape[0]
        g_ref[...] = g_ref[...] * (1.0 / float(nl * ml))


def _gram_mse_kernel(x_ref, a_ref, e_ref, acc_ref, *, ml, tk, ragged, mxu_dtype):
    """E = mean((G - A)^2) with G = (X @ X.T)/(Nl*Ml); G never touches HBM."""
    k = pl.program_id(0)
    last = pl.num_programs(0) - 1

    @pl.when(k == 0)
    def _():
        acc_ref[...] = jnp.zeros_like(acc_ref)

    if ragged:
        @pl.when(k != last)
        def _():
            _accumulate_xxt(x_ref, acc_ref, k=k, ml=ml, tk=tk,
                            mask_tail=False, mxu_dtype=mxu_dtype)

        @pl.when(k == last)
        def _():
            _accumulate_xxt(x_ref, acc_ref, k=k, ml=ml, tk=tk,
                            mask_tail=True, mxu_dtype=mxu_dtype)
    else:
        _accumulate_xxt(x_ref, acc_ref, k=k, ml=ml, tk=tk,
                        mask_tail=False, mxu_dtype=mxu_dtype)

    @pl.when(k == last)
    def _():
        nl = a_ref.shape[0]
        g = acc_ref[...] * (1.0 / float(nl * ml))
        d = g - a_ref[...].astype(jnp.float32)
        e_ref[...] = jnp.mean(d * d).reshape(1, 1)


# ----------------------------------------------------------------------------
# Wrappers
# ----------------------------------------------------------------------------
def gram_matrix_pallas(activation, *, tk=None):
    """activation: (B=1, Nl, H, W) -> (Nl, Nl) normalized Gram matrix (f32)."""
    B, Nl, H, W = activation.shape
    assert B == 1, "StyleLayer.gram_matrix requires batch size 1 (view(Nl, Ml))"
    Ml = H * W
    x2d = activation.reshape(Nl, Ml)   # metadata-only reshape; keep native dtype
    itemsize = x2d.dtype.itemsize

    fixed = 2 * Nl * Nl * 4            # double-buffered (Nl, Nl) f32 output block
    if tk is None:
        tk = _pick_tk(Ml, Nl, itemsize, fixed)
    grid_k = pl.cdiv(Ml, tk)
    ragged = (Ml % tk) != 0
    mxu_dtype = _mxu_dtype_for(x2d.dtype, Nl)

    return pl.pallas_call(
        functools.partial(_gram_kernel, ml=Ml, tk=tk, ragged=ragged,
                          mxu_dtype=mxu_dtype),
        out_shape=jax.ShapeDtypeStruct((Nl, Nl), jnp.float32),
        grid_spec=pltpu.PrefetchScalarGridSpec(
            num_scalar_prefetch=0,
            grid=(grid_k,),
            in_specs=[pl.BlockSpec((Nl, tk), lambda k: (0, k))],
            out_specs=pl.BlockSpec((Nl, Nl), lambda k: (0, 0)),
        ),
        compiler_params=pltpu.CompilerParams(
            dimension_semantics=("arbitrary",),
            vmem_limit_bytes=_vmem_limit(Nl, tk, itemsize, fixed),
        ),
        cost_estimate=pl.CostEstimate(
            flops=2 * Nl * Nl * Ml,
            transcendentals=0,
            bytes_accessed=Nl * Ml * itemsize + Nl * Nl * 4,
        ),
    )(x2d)


def gram_mse_pallas(activation, A, *, tk=None):
    """Fused Gram + MSE-vs-A: returns scalar E = mean((gram(activation) - A)^2)."""
    B, Nl, H, W = activation.shape
    assert B == 1, "StyleLayer.gram_matrix requires batch size 1 (view(Nl, Ml))"
    Ml = H * W
    x2d = activation.reshape(Nl, Ml)
    itemsize = x2d.dtype.itemsize

    # A (double-buffered, constant index map) + f32 accumulator scratch.
    fixed = 2 * Nl * Nl * 4 + Nl * Nl * 4
    if tk is None:
        tk = _pick_tk(Ml, Nl, itemsize, fixed)
    grid_k = pl.cdiv(Ml, tk)
    ragged = (Ml % tk) != 0
    mxu_dtype = _mxu_dtype_for(x2d.dtype, Nl)

    e = pl.pallas_call(
        functools.partial(_gram_mse_kernel, ml=Ml, tk=tk, ragged=ragged,
                          mxu_dtype=mxu_dtype),
        out_shape=jax.ShapeDtypeStruct((1, 1), jnp.float32),
        grid_spec=pltpu.PrefetchScalarGridSpec(
            num_scalar_prefetch=0,
            grid=(grid_k,),
            in_specs=[
                pl.BlockSpec((Nl, tk), lambda k: (0, k)),   # X, tiled over Ml
                pl.BlockSpec((Nl, Nl), lambda k: (0, 0)),   # A, resident across K
            ],
            out_specs=pl.BlockSpec((1, 1), lambda k: (0, 0)),
            scratch_shapes=[pltpu.VMEM((Nl, Nl), jnp.float32)],
        ),
        compiler_params=pltpu.CompilerParams(
            dimension_semantics=("arbitrary",),
            vmem_limit_bytes=_vmem_limit(Nl, tk, itemsize, fixed),
        ),
        cost_estimate=pl.CostEstimate(
            flops=2 * Nl * Nl * Ml + 3 * Nl * Nl,
            transcendentals=0,
            bytes_accessed=Nl * Ml * itemsize + Nl * Nl * 4 + 4,
        ),
    )(x2d, A.astype(jnp.float32))
    return e[0, 0]


class StyleLayer:
    """JAX/Pallas port of the PyTorch StyleLayer module."""

    def __init__(self, A_activation):
        # Target Gram matrix (constant, "detached").
        self.A = jax.lax.stop_gradient(gram_matrix_pallas(A_activation))
        self.E = None

    def __call__(self, G_activation):
        # Fused gram + MSE; G itself never round-trips through HBM.
        self.E = gram_mse_pallas(G_activation, self.A)
        return G_activation  # forward is an identity pass-through


# ----------------------------------------------------------------------------
# Demo / self-test
# ----------------------------------------------------------------------------
if __name__ == "__main__":
    key = jax.random.PRNGKey(0)
    k_a, k_g, k_a2, k_g2 = jax.random.split(key, 4)

    def ref_gram(act):
        b, nl, h, w = act.shape
        x = act.reshape(nl, h * w)
        return (x @ x.T) / (nl * h * w)

    # --- Case 1: small layer, auto tile selection (single K tile). ---
    B, C, H, W = 1, 8, 16, 16
    A_act = jax.random.normal(k_a, (B, C, H, W), dtype=jnp.float32)
    G_act = jax.random.normal(k_g, (B, C, H, W), dtype=jnp.float32)

    layer = StyleLayer(A_act)
    out = jax.block_until_ready(layer(G_act))
    E = jax.block_until_ready(layer.E)

    A_ref = ref_gram(A_act)
    E_ref = jnp.mean((ref_gram(G_act) - A_ref) ** 2)
    assert out.shape == G_act.shape
    assert jnp.allclose(out, G_act)
    assert jnp.allclose(layer.A, A_ref, atol=1e-5, rtol=1e-5)
    assert jnp.allclose(E, E_ref, atol=1e-5, rtol=1e-5)

    # --- Case 2: forced small K tile with a ragged tail, exercising the
    #     multi-step accumulation and last-tile-only masking path. ---
    B2, C2, H2, W2 = 1, 16, 16, 10     # Ml = 160 -> 2 K steps of 128, ragged
    A_act2 = jax.random.normal(k_a2, (B2, C2, H2, W2), dtype=jnp.float32)
    G_act2 = jax.random.normal(k_g2, (B2, C2, H2, W2), dtype=jnp.float32)

    A2 = gram_matrix_pallas(A_act2, tk=128)
    E2 = gram_mse_pallas(G_act2, A2, tk=128)
    A2 = jax.block_until_ready(A2)
    E2 = jax.block_until_ready(E2)

    A2_ref = ref_gram(A_act2)
    E2_ref = jnp.mean((ref_gram(G_act2) - A2_ref) ** 2)
    assert jnp.allclose(A2, A2_ref, atol=1e-5, rtol=1e-5)
    assert jnp.allclose(E2, E2_ref, atol=1e-5, rtol=1e-5)

    print("KERNEL_OK")
</pallas_src>

<mosaic_0001>
module attributes {stable_mosaic.version = 11 : i64} {
  func.func @_gram_kernel(%arg0: i32, %arg1: memref<8x256xf32, #tpu.memory_space<vmem>>, %arg2: memref<8x8xf32, #tpu.memory_space<vmem>>) attributes {dimension_semantics = [#tpu.dimension_semantics<arbitrary>], iteration_bounds = array<i64: 1>, scalar_prefetch = 0 : i64, scratch_operands = 0 : i64, tpu.core_type = #tpu.core_type<tc>, window_params = [{transform_indices = @transform_0, window_bounds = array<i64: 8, 256>}, {pipeline_mode = #tpu.pipeline_mode<synchronous>, transform_indices = @transform_1, window_bounds = array<i64: 8, 8>}]} {
    %c0_i32 = arith.constant 0 : i32
    %0 = arith.cmpi eq, %arg0, %c0_i32 : i32
    %1 = arith.extui %0 : i1 to i32
    %c0_i32_0 = arith.constant 0 : i32
    %2 = arith.cmpi ne, %1, %c0_i32_0 : i32
    scf.if %2 {
      %cst_8 = arith.constant 0.000000e+00 : f32
      %11 = vector.broadcast %cst_8 : f32 to vector<8x8xf32>
      %c0_9 = arith.constant 0 : index
      %c0_10 = arith.constant 0 : index
      %12 = vector.load %arg2[%c0_9, %c0_10] : memref<8x8xf32, #tpu.memory_space<vmem>>, vector<8x8xf32>
      tpu.vector_store %arg2[%c0_9, %c0_10], %11 {strides = array<i32>} : memref<8x8xf32, #tpu.memory_space<vmem>>, vector<8x8xf32>,
    } else {
    }
    %c0 = arith.constant 0 : index
    %c0_1 = arith.constant 0 : index
    %3 = vector.load %arg1[%c0, %c0_1] : memref<8x256xf32, #tpu.memory_space<vmem>>, vector<8x256xf32>
    %c0_2 = arith.constant 0 : index
    %c0_3 = arith.constant 0 : index
    %4 = vector.load %arg2[%c0_2, %c0_3] : memref<8x8xf32, #tpu.memory_space<vmem>>, vector<8x8xf32>
    %cst = arith.constant dense<0.000000e+00> : vector<8x8xf32>
    %5 = tpu.matmul %3, %3, %cst {dimension_numbers = #tpu.dot_dimension_numbers<[1], [1], [0], [0], [0, 0, 1, 0], [], []>} : vector<8x256xf32>, vector<8x256xf32>, vector<8x8xf32> -> vector<8x8xf32>
    %6 = arith.addf %4, %5 : vector<8x8xf32>
    %c0_4 = arith.constant 0 : index
    %c0_5 = arith.constant 0 : index
    %7 = vector.load %arg2[%c0_4, %c0_5] : memref<8x8xf32, #tpu.memory_space<vmem>>, vector<8x8xf32>
    tpu.vector_store %arg2[%c0_4, %c0_5], %6 {strides = array<i32>} : memref<8x8xf32, #tpu.memory_space<vmem>>, vector<8x8xf32>,
    %c0_i32_6 = arith.constant 0 : i32
    %8 = arith.cmpi eq, %arg0, %c0_i32_6 : i32
    %9 = arith.extui %8 : i1 to i32
    %c0_i32_7 = arith.constant 0 : i32
    %10 = arith.cmpi ne, %9, %c0_i32_7 : i32
    scf.if %10 {
      %c0_8 = arith.constant 0 : index
      %c0_9 = arith.constant 0 : index
      %11 = vector.load %arg2[%c0_8, %c0_9] : memref<8x8xf32, #tpu.memory_space<vmem>>, vector<8x8xf32>
      %cst_10 = arith.constant 4.8828125E-4 : f32
      %12 = vector.broadcast %cst_10 : f32 to vector<8x8xf32>
      %13 = arith.mulf %11, %12 : vector<8x8xf32>
      %c0_11 = arith.constant 0 : index
      %c0_12 = arith.constant 0 : index
      %14 = vector.load %arg2[%c0_11, %c0_12] : memref<8x8xf32, #tpu.memory_space<vmem>>, vector<8x8xf32>
      tpu.vector_store %arg2[%c0_11, %c0_12], %13 {strides = array<i32>} : memref<8x8xf32, #tpu.memory_space<vmem>>, vector<8x8xf32>,
    } else {
    }
    return
  }
  func.func @transform_0(%arg0: i32) -> (i32, i32) {
    %c0_i32 = arith.constant 0 : i32
    %c0_i32_0 = arith.constant 0 : i32
    return %c0_i32, %arg0 : i32, i32
  }
  func.func @transform_1(%arg0: i32) -> (i32, i32) {
    %c0_i32 = arith.constant 0 : i32
    %c0_i32_0 = arith.constant 0 : i32
    %c0_i32_1 = arith.constant 0 : i32
    return %c0_i32, %c0_i32_0 : i32, i32
  }
}

</mosaic_0001>

<llo_original>
// kernel: tpu_custom_call.1
$region0: #{tpu_custom_call.1}
  #allocation0 [shape = 'u32[]', space=smem, size = 0x4, offset = 0x4, fixed_abs, tag = 'smem constant byte address 0x4 - core index']
  #allocation1 [shape = 'u32[72,128]{1,0:T(1,128)}', space=vmem, size = 0x9000, scoped, tag = 'internal scratch']
  %s0 = inlined_call_operand.hbm [shape: f32[8,256], index: 0, kind: input, shape index: {}]
  %s1 = inlined_call_operand.hbm [shape: f32[8,8], index: 1, kind: output, shape index: {}]
  %s2 = sld [smem:[#allocation0]]
  $region26: #{tpu_custom_call.1} parent=0
    _
  %s4 = ssub.s32 1, %s2
  %s5 = scalar_select 0, %s4, %s2
  $region1: #{tpu_custom_call.1} parent=0
    #allocation2 [shape = 'u8[8192]{0}', space=vmem, size = 0x2000, scoped, tag = 'input window, operand 0, single buffered']
    #allocation3 [shape = 's32[1]{0}', space=sflag, size = 0x4, scoped, tag = 'scoped memory for tpu_custom_call.1']
    #allocation4 [shape = 's32[1]{0}', space=sflag, size = 0x4, scoped, tag = 'scoped memory for tpu_custom_call.1']
    #allocation5 [shape = 'u8[4096]{0}', space=vmem, size = 0x1000, scoped, tag = 'output window, operand 0, single buffered']
    %6 = vsyncpa [#allocation3], 0
    %7 = vsyncpa [#allocation4], 0
    // Predicated region
    $region2: #{tpu_custom_call.1} parent=1 // pred_check
      _
    $region3: #{tpu_custom_call.1} parent=1 // pred_check_branch
      %9 = sbr.rel (0) target = $region5
    $region4: #{tpu_custom_call.1} parent=1 // pred_region
      %11 = vsyncadd [#allocation3], 0
      %s13 = sshll.u32 %s0, 4
      %s14 = int_to_ptr.hbm [resolvable:$true] %s13
      %s15 = sshll.u32 [#allocation2], 4
      %s16 = int_to_ptr.vmem [resolvable:$true] %s15
      %18 = dma.hbm_to_vmem [thread:$0]  %s14, 256, %s16, [#allocation3]
    $region5: #{tpu_custom_call.1} parent=1 // pred_fallthru
      _
    // Predicated region
    $region6: #{tpu_custom_call.1} parent=1 // pred_check
      _
    $region7: #{tpu_custom_call.1} parent=1 // pred_check_branch
      %20 = sbr.rel (0) target = $region9
    $region8: #{tpu_custom_call.1} parent=1 // pred_region
      %22 = dma.done [#allocation3], 256
    $region9: #{tpu_custom_call.1} parent=1 // pred_fallthru
      _
    %p23 = scmp.eq.s32.totalorder 0, 0
    // Predicated region
    $region10: #{tpu_custom_call.1} parent=1 // pred_check
      %p24 = pneg %p23
    $region11: #{tpu_custom_call.1} parent=1 // pred_check_branch
      %26 = sbr.rel (%p24) target = $region13
    $region12: #{tpu_custom_call.1} parent=1 // pred_region
      %vm27 = vcmask 64512
      %28 = vst.msk [vmem:[#allocation5] sm:$0xff] %vm27, 0.0
    $region13: #{tpu_custom_call.1} parent=1 // pred_fallthru
      _
    %v29 = vld [vmem:[#allocation2] sm:$0xff]
    %v30 = vld [vmem:[#allocation2 + $0x8] sm:$0xff]
    %v31 = vld [vmem:[#allocation5] sm:$0xff]
    %32 = vmatpush.xpose.msra.mxu0 0.0
    %33 = vmatpush.xpose.msra.mxu0 0.0
    %34 = vmatpush.xpose.msra.mxu0 0.0
    %35 = vmatpush.xpose.msra.mxu0 0.0
    %36 = vmatpush.xpose.msra.mxu0 0.0
    %37 = vmatpush.xpose.msra.mxu0 0.0
    %38 = vmatpush.xpose.msra.mxu0 0.0
    %39 = vmatpush.xpose.msra.mxu0 0.0
    %40 = vmatpush.xpose.msra.mxu0 0.0
    %41 = vmatpush.xpose.msra.mxu0 0.0
    %42 = vmatpush.xpose.msra.mxu0 0.0
    %43 = vmatpush.xpose.msra.mxu0 0.0
    %44 = vmatpush.xpose.msra.mxu0 0.0
    %45 = vmatpush.xpose.msra.mxu0 0.0
    %46 = vmatpush.xpose.msra.mxu0 0.0
    %47 = vmatpush.xpose.msra.mxu0 %v29
    %48 = vmatmul.f32.gmra.mxu0 %v29
    %v49 = vpop.f32.mrf.mxu0
    %v50 = vadd.f32 0.0, %v49
    %51 = vdwg.mxu0
    %52 = vmatpush.xpose.msra.mxu0 0.0
    %53 = vmatpush.xpose.msra.mxu0 0.0
    %54 = vmatpush.xpose.msra.mxu0 0.0
    %55 = vmatpush.xpose.msra.mxu0 0.0
    %56 = vmatpush.xpose.msra.mxu0 0.0
    %57 = vmatpush.xpose.msra.mxu0 0.0
    %58 = vmatpush.xpose.msra.mxu0 0.0
    %59 = vmatpush.xpose.msra.mxu0 0.0
    %60 = vmatpush.xpose.msra.mxu0 0.0
    %61 = vmatpush.xpose.msra.mxu0 0.0
    %62 = vmatpush.xpose.msra.mxu0 0.0
    %63 = vmatpush.xpose.msra.mxu0 0.0
    %64 = vmatpush.xpose.msra.mxu0 0.0
    %65 = vmatpush.xpose.msra.mxu0 0.0
    %66 = vmatpush.xpose.msra.mxu0 0.0
    %67 = vmatpush.xpose.msra.mxu0 %v30
    %68 = vmatmul.f32.gmra.mxu0 %v30
    %v69 = vpop.f32.mrf.mxu0
    %v70 = vadd.f32 %v50, %v69
    %71 = vdwg.mxu0
    %v72 = vadd.f32 %v31, %v70
    %vm73 = vcmask 64512
    %74 = vst.msk [vmem:[#allocation5] sm:$0xff] %vm73, %v72
    // Predicated region
    $region14: #{tpu_custom_call.1} parent=1 // pred_check
      %p75 = pneg %p23
    $region15: #{tpu_custom_call.1} parent=1 // pred_check_branch
      %77 = sbr.rel (%p75) target = $region17
    $region16: #{tpu_custom_call.1} parent=1 // pred_region
      %v78 = vld [vmem:[#allocation5] sm:$0xff]
      %v79 = vmul.f32 %v78, 0.00048828125
      %80 = vst.msk [vmem:[#allocation5] sm:$0xff] %vm73, %v79
    $region17: #{tpu_custom_call.1} parent=1 // pred_fallthru
      _
    // Predicated region
    $region18: #{tpu_custom_call.1} parent=1 // pred_check
      _
    $region19: #{tpu_custom_call.1} parent=1 // pred_check_branch
      %82 = sbr.rel (0) target = $region21
    $region20: #{tpu_custom_call.1} parent=1 // pred_region
      %84 = vsyncadd [#allocation4], 0
      %s86 = sshll.u32 [#allocation5], 4
      %s87 = int_to_ptr.vmem [resolvable:$true] %s86
      %s88 = sshll.u32 %s1, 4
      %s89 = int_to_ptr.hbm [resolvable:$true] %s88
      %91 = dma.vmem_to_hbm [thread:$0]  %s87, 128, %s89, [#allocation4]
    $region21: #{tpu_custom_call.1} parent=1 // pred_fallthru
      _
    // Predicated region
    $region22: #{tpu_custom_call.1} parent=1 // pred_check
      _
    $region23: #{tpu_custom_call.1} parent=1 // pred_check_branch
      %93 = sbr.rel (0) target = $region25
    $region24: #{tpu_custom_call.1} parent=1 // pred_region
      %95 = dma.done [#allocation4], 128
    $region25: #{tpu_custom_call.1} parent=1 // pred_fallthru
      _
    %96 = vsyncpa [#allocation3], 1
    %97 = vsyncpa [#allocation4], 1

</llo_original>
